<compile_context>
chip_gen: v6e
topology: v6e:2x2x1
jax: 0.10.0
libtpu: 0.0.40
codegen_flags: <defaults>
</compile_context>

<pallas_src>
import math

import jax
import jax.numpy as jnp
from jax import lax
from jax.experimental import pallas as pl
from jax.experimental.pallas import tpu as pltpu

# ----------------------------- model config ---------------------------------
BATCH = 2
CHANNELS = 3
IMAGE_SIZE = 16
PATCH_SIZE = 8
HIDDEN = 32
NUM_HEADS = 2
HEAD_DIM = HIDDEN // NUM_HEADS
MLP_DIM = 64
NUM_LAYERS = 2
NUM_PATCHES = (IMAGE_SIZE // PATCH_SIZE) ** 2          # 4
NUM_TOKENS = NUM_PATCHES + 1                           # 5 (CLS + patches)
T_PAD = ((NUM_TOKENS + 7) // 8) * 8                    # 8 (sublane-aligned)
LN_EPS = 1e-5

SELECT_LAYER = -2             # args.mm_vision_select_layer
SELECT_FEATURE = "cls_patch"  # 'patch' raises NotImplementedError in the module


# ----------------------------- shared helpers --------------------------------
def _layernorm(x, g, b):
    mu = jnp.mean(x, axis=-1, keepdims=True)
    var = jnp.mean((x - mu) ** 2, axis=-1, keepdims=True)
    return (x - mu) * lax.rsqrt(var + LN_EPS) * g + b


# ----------------------------- Pallas kernels --------------------------------
def embed_kernel(patch_ref, w_ref, pb_ref, cls_ref, pos_ref, g_ref, b_ref, o_ref):
    """Fused patch-embedding matmul + CLS insert + pos add + pre-LayerNorm.

    patch_ref: [1, NP, K]   (one image's unfolded patches)
    w_ref:     [K, D]       pb_ref/cls_ref/g_ref/b_ref: [1, D]
    pos_ref:   [T_PAD, D]   (zero-padded past NUM_TOKENS)
    o_ref:     [1, T_PAD, D]
    """
    pe = jnp.dot(patch_ref[0], w_ref[...],
                 preferred_element_type=jnp.float32) + pb_ref[...]       # [NP, D]

    # Scatter patch rows to token positions 1..NP via a tiny MXU matmul
    # (avoids in-kernel concatenate / unaligned sublane stores).
    row = lax.broadcasted_iota(jnp.int32, (T_PAD, NUM_PATCHES), 0)
    col = lax.broadcasted_iota(jnp.int32, (T_PAD, NUM_PATCHES), 1)
    scatter = (row == col + 1).astype(jnp.float32)                       # [T_PAD, NP]
    x = jnp.dot(scatter, pe, preferred_element_type=jnp.float32)         # [T_PAD, D]

    is_cls = (lax.broadcasted_iota(jnp.int32, (T_PAD, 1), 0) == 0).astype(jnp.float32)
    x = x + is_cls * cls_ref[...]        # CLS token at row 0
    x = x + pos_ref[...]                 # position embedding (zeros on pad rows)

    o_ref[0] = _layernorm(x, g_ref[...], b_ref[...]).astype(o_ref.dtype)


def encoder_stack_kernel(x_ref,
                         ln1g_ref, ln1b_ref,
                         wqkv_ref, bqkv_ref, wo_ref, bo_ref,
                         ln2g_ref, ln2b_ref,
                         w1_ref, b1_ref, w2_ref, b2_ref,
                         o_ref):
    """One grid step == one transformer layer; hidden state resident in o_ref."""
    l = pl.program_id(0)

    @pl.when(l == 0)
    def _():
        o_ref[...] = x_ref[...]          # initialize resident hidden state

    x = o_ref[...].astype(jnp.float32)   # [B, T_PAD, D]

    # ---- self-attention block (pre-LN) ----
    h = _layernorm(x, ln1g_ref[0], ln1b_ref[0])
    qkv = jnp.einsum('btd,de->bte', h, wqkv_ref[0],
                     preferred_element_type=jnp.float32) + bqkv_ref[0]   # [B, T, 3D]

    scale = 1.0 / math.sqrt(HEAD_DIM)
    kmask = lax.broadcasted_iota(jnp.int32, (T_PAD, T_PAD), 1) < NUM_TOKENS

    attn = jnp.zeros_like(x)
    wo = wo_ref[0]                       # [D, D]
    # NOTE: at real CLIP scale, heads should be batched onto the leading axis
    # instead of a static per-head loop; at NUM_HEADS=2 this stays tiny.
    for hh in range(NUM_HEADS):
        lo, hi = hh * HEAD_DIM, (hh + 1) * HEAD_DIM
        q_h = qkv[:, :, lo:hi]
        k_h = qkv[:, :, HIDDEN + lo:HIDDEN + hi]
        v_h = qkv[:, :, 2 * HIDDEN + lo:2 * HIDDEN + hi]
        s = jnp.einsum('bqd,bkd->bqk', q_h, k_h,
                       preferred_element_type=jnp.float32) * scale
        s = jnp.where(kmask, s, -1e30)                 # mask padded key tokens
        s = s - jnp.max(s, axis=-1, keepdims=True)
        p = jnp.exp(s)
        p = p * pl.reciprocal(jnp.sum(p, axis=-1, keepdims=True), approx=True)
        ctx = jnp.einsum('bqk,bkd->bqd', p, v_h,
                         preferred_element_type=jnp.float32)
        # fold the per-head output projection: concat(ctx_h) @ wo == sum_h ctx_h @ wo[h]
        attn = attn + jnp.einsum('btd,de->bte', ctx, wo[lo:hi, :],
                                 preferred_element_type=jnp.float32)
    x = x + attn + bo_ref[0]

    # ---- MLP block (pre-LN, quick-GELU as in CLIP) ----
    h2 = _layernorm(x, ln2g_ref[0], ln2b_ref[0])
    m = jnp.einsum('btd,df->btf', h2, w1_ref[0],
                   preferred_element_type=jnp.float32) + b1_ref[0]
    m = m * jax.nn.sigmoid(1.702 * m)                  # quick_gelu
    m = jnp.einsum('btf,fd->btd', m, w2_ref[0],
                   preferred_element_type=jnp.float32) + b2_ref[0]

    o_ref[...] = (x + m).astype(o_ref.dtype)


# ----------------------------- Pallas wrappers -------------------------------
def embed_tokens(patches, w_flat, patch_b, cls, pos_pad, g, b):
    B, NP, K = patches.shape
    D = HIDDEN
    return pl.pallas_call(
        embed_kernel,
        out_shape=jax.ShapeDtypeStruct((B, T_PAD, D), patches.dtype),
        grid=(B,),
        in_specs=[
            pl.BlockSpec((1, NP, K), lambda i: (i, 0, 0)),
            pl.BlockSpec((K, D), lambda i: (0, 0)),
            pl.BlockSpec((1, D), lambda i: (0, 0)),
            pl.BlockSpec((1, D), lambda i: (0, 0)),
            pl.BlockSpec((T_PAD, D), lambda i: (0, 0)),
            pl.BlockSpec((1, D), lambda i: (0, 0)),
            pl.BlockSpec((1, D), lambda i: (0, 0)),
        ],
        out_specs=pl.BlockSpec((1, T_PAD, D), lambda i: (i, 0, 0)),
        compiler_params=pltpu.CompilerParams(dimension_semantics=("parallel",)),
    )(patches, w_flat, patch_b, cls, pos_pad, g, b)


def encoder_stack(x_emb, params, num_layers):
    B, T, D = x_emb.shape

    def per_layer(name):
        shape = params[name].shape
        return pl.BlockSpec((1,) + tuple(shape[1:]), lambda l: (l, 0, 0))

    resident = pl.BlockSpec((B, T, D), lambda l: (0, 0, 0))

    return pl.pallas_call(
        encoder_stack_kernel,
        out_shape=jax.ShapeDtypeStruct((B, T, D), x_emb.dtype),
        grid=(num_layers,),
        in_specs=[
            resident,
            per_layer("ln1_g"), per_layer("ln1_b"),
            per_layer("wqkv"), per_layer("bqkv"),
            per_layer("wo"), per_layer("bo"),
            per_layer("ln2_g"), per_layer("ln2_b"),
            per_layer("w1"), per_layer("b1"),
            per_layer("w2"), per_layer("b2"),
        ],
        out_specs=resident,
        compiler_params=pltpu.CompilerParams(dimension_semantics=("arbitrary",)),
    )(x_emb,
      params["ln1_g"], params["ln1_b"],
      params["wqkv"], params["bqkv"],
      params["wo"], params["bo"],
      params["ln2_g"], params["ln2_b"],
      params["w1"], params["b1"],
      params["w2"], params["b2"])


# ----------------------------- vision tower ----------------------------------
def get_transcriptome_features(images, params, num_layers_to_run):
    """Runs embedding + the first `num_layers_to_run` encoder layers."""
    B, C, H, W = images.shape
    p = PATCH_SIZE
    nh, nw = H // p, W // p

    # unfold NCHW image into patches: [B, nh*nw, C*p*p] (matches Conv2d weight layout)
    x = images.reshape(B, C, nh, p, nw, p)
    x = jnp.transpose(x, (0, 2, 4, 1, 3, 5))                 # B, nh, nw, C, p, p
    patches = x.reshape(B, nh * nw, C * p * p)

    w_flat = params["patch_w"].reshape(HIDDEN, C * p * p).T  # [C*p*p, D]
    pos_pad = jnp.concatenate(
        [params["pos"],
         jnp.zeros((T_PAD - NUM_TOKENS, HIDDEN), params["pos"].dtype)], axis=0)

    h = embed_tokens(patches, w_flat,
                     params["patch_b"].reshape(1, HIDDEN),
                     params["cls"].reshape(1, HIDDEN),
                     pos_pad,
                     params["pre_ln_g"].reshape(1, HIDDEN),
                     params["pre_ln_b"].reshape(1, HIDDEN))

    if num_layers_to_run > 0:
        h = encoder_stack(h, params, num_layers_to_run)

    return h[:, :NUM_TOKENS, :]          # drop token padding


def clip_vision_tower_forward(images, params,
                              select_layer=SELECT_LAYER,
                              select_feature=SELECT_FEATURE):
    # feature_select semantics: -1 -> last hidden state, -2 -> penultimate.
    # For -2 the final layer's output is never used, so we skip computing it.
    if select_layer == -1:
        num_run = NUM_LAYERS
    elif select_layer == -2:
        num_run = NUM_LAYERS - 1
    else:
        raise ValueError(f"Unexpected select layer: {select_layer}")

    if select_feature == "patch":
        raise NotImplementedError("Patch not implemented")
    elif select_feature == "cls_patch":
        pass  # keep all tokens (CLS + patches)
    else:
        raise ValueError(f"Unexpected select feature: {select_feature}")

    feats = get_transcriptome_features(images.astype(jnp.float32), params, num_run)
    return feats.astype(images.dtype)


# ----------------------------- parameter init --------------------------------
def init_params(key):
    def nrm(k, shape, scale=0.02):
        return scale * jax.random.normal(k, shape, dtype=jnp.float32)

    D, F, L = HIDDEN, MLP_DIM, NUM_LAYERS
    keys = jax.random.split(key, 4)
    lk = jax.random.split(keys[3], 6)

    wq = nrm(lk[0], (L, D, D))
    wk = nrm(lk[1], (L, D, D))
    wv = nrm(lk[2], (L, D, D))

    params = {
        "patch_w": nrm(keys[0], (HIDDEN, CHANNELS, PATCH_SIZE, PATCH_SIZE)),
        "patch_b": jnp.zeros((HIDDEN,), jnp.float32),
        "cls": nrm(keys[1], (HIDDEN,)),
        "pos": nrm(keys[2], (NUM_TOKENS, HIDDEN)),
        "pre_ln_g": jnp.ones((HIDDEN,), jnp.float32),
        "pre_ln_b": jnp.zeros((HIDDEN,), jnp.float32),
        # encoder weights stacked over layers for the fused layer-grid kernel
        "ln1_g": jnp.ones((L, 1, D), jnp.float32),
        "ln1_b": jnp.zeros((L, 1, D), jnp.float32),
        "wqkv": jnp.concatenate([wq, wk, wv], axis=-1),      # [L, D, 3D]
        "bqkv": jnp.zeros((L, 1, 3 * D), jnp.float32),
        "wo": nrm(lk[3], (L, D, D)),
        "bo": jnp.zeros((L, 1, D), jnp.float32),
        "ln2_g": jnp.ones((L, 1, D), jnp.float32),
        "ln2_b": jnp.zeros((L, 1, D), jnp.float32),
        "w1": nrm(lk[4], (L, D, F)),
        "b1": jnp.zeros((L, 1, F), jnp.float32),
        "w2": nrm(lk[5], (L, F, D)),
        "b2": jnp.zeros((L, 1, D), jnp.float32),
    }
    return params


# ----------------------------- main -------------------------------------------
if __name__ == "__main__":
    key = jax.random.PRNGKey(0)
    pkey, xkey = jax.random.split(key)
    params = init_params(pkey)

    # images: NCHW, like PyTorch
    images = jax.random.normal(xkey, (BATCH, CHANNELS, IMAGE_SIZE, IMAGE_SIZE),
                               dtype=jnp.float32)

    feats = clip_vision_tower_forward(images, params)
    feats = jax.block_until_ready(feats)

    assert feats.shape == (BATCH, NUM_TOKENS, HIDDEN), feats.shape
    assert feats.dtype == images.dtype
    assert bool(jnp.all(jnp.isfinite(feats)))

    print("KERNEL_OK")
</pallas_src>

<mosaic_0001>
module attributes {stable_mosaic.version = 11 : i64} {
  func.func @embed_kernel(%arg0: i32, %arg1: memref<1x4x192xf32, #tpu.memory_space<vmem>>, %arg2: memref<192x32xf32, #tpu.memory_space<vmem>>, %arg3: memref<1x32xf32, #tpu.memory_space<vmem>>, %arg4: memref<1x32xf32, #tpu.memory_space<vmem>>, %arg5: memref<8x32xf32, #tpu.memory_space<vmem>>, %arg6: memref<1x32xf32, #tpu.memory_space<vmem>>, %arg7: memref<1x32xf32, #tpu.memory_space<vmem>>, %arg8: memref<1x8x32xf32, #tpu.memory_space<vmem>>) attributes {dimension_semantics = [#tpu.dimension_semantics<parallel>], iteration_bounds = array<i64: 2>, scalar_prefetch = 0 : i64, scratch_operands = 0 : i64, tpu.core_type = #tpu.core_type<tc>, window_params = [{transform_indices = @transform_0, window_bounds = array<i64: 1, 4, 192>}, {pipeline_mode = #tpu.pipeline_mode<synchronous>, transform_indices = @transform_1, window_bounds = array<i64: 192, 32>}, {pipeline_mode = #tpu.pipeline_mode<synchronous>, transform_indices = @transform_2, window_bounds = array<i64: 1, 32>}, {pipeline_mode = #tpu.pipeline_mode<synchronous>, transform_indices = @transform_3, window_bounds = array<i64: 1, 32>}, {pipeline_mode = #tpu.pipeline_mode<synchronous>, transform_indices = @transform_4, window_bounds = array<i64: 8, 32>}, {pipeline_mode = #tpu.pipeline_mode<synchronous>, transform_indices = @transform_5, window_bounds = array<i64: 1, 32>}, {pipeline_mode = #tpu.pipeline_mode<synchronous>, transform_indices = @transform_6, window_bounds = array<i64: 1, 32>}, {transform_indices = @transform_7, window_bounds = array<i64: 1, 8, 32>}]} {
    %c0 = arith.constant 0 : index
    %c0_0 = arith.constant 0 : index
    %c0_1 = arith.constant 0 : index
    %0 = vector.load %arg1[%c0, %c0_0, %c0_1] : memref<1x4x192xf32, #tpu.memory_space<vmem>>, vector<1x4x192xf32>
    %1 = vector.shape_cast %0 : vector<1x4x192xf32> to vector<4x192xf32>
    %c0_2 = arith.constant 0 : index
    %c0_3 = arith.constant 0 : index
    %2 = vector.load %arg2[%c0_2, %c0_3] : memref<192x32xf32, #tpu.memory_space<vmem>>, vector<192x32xf32>
    %cst = arith.constant dense<0.000000e+00> : vector<4x32xf32>
    %3 = tpu.matmul %1, %2, %cst {dimension_numbers = #tpu.dot_dimension_numbers<[1], [0], [0], [1], [0, 0, 1, 1], [], []>} : vector<4x192xf32>, vector<192x32xf32>, vector<4x32xf32> -> vector<4x32xf32>
    %c0_4 = arith.constant 0 : index
    %c0_5 = arith.constant 0 : index
    %4 = vector.load %arg3[%c0_4, %c0_5] : memref<1x32xf32, #tpu.memory_space<vmem>>, vector<1x32xf32>
    %5 = vector.broadcast %4 : vector<1x32xf32> to vector<4x32xf32>
    %6 = arith.addf %3, %5 : vector<4x32xf32>
    %7 = tpu.iota {dimensions = array<i32: 0>} : vector<8x4xi32>
    %8 = tpu.iota {dimensions = array<i32: 1>} : vector<8x4xi32>
    %c1_i32 = arith.constant 1 : i32
    %9 = vector.broadcast %c1_i32 : i32 to vector<8x4xi32>
    %10 = arith.addi %8, %9 : vector<8x4xi32>
    %11 = arith.cmpi eq, %7, %10 : vector<8x4xi32>
    %12 = arith.extui %11 : vector<8x4xi1> to vector<8x4xi32>
    %13 = arith.sitofp %12 : vector<8x4xi32> to vector<8x4xf32>
    %cst_6 = arith.constant dense<0.000000e+00> : vector<8x32xf32>
    %14 = tpu.matmul %13, %6, %cst_6 {dimension_numbers = #tpu.dot_dimension_numbers<[1], [0], [0], [1], [0, 0, 1, 1], [], []>} : vector<8x4xf32>, vector<4x32xf32>, vector<8x32xf32> -> vector<8x32xf32>
    %15 = tpu.iota {dimensions = array<i32: 0>} : vector<8x1xi32>
    %c0_i32 = arith.constant 0 : i32
    %16 = vector.broadcast %c0_i32 : i32 to vector<8x1xi32>
    %17 = arith.cmpi eq, %15, %16 : vector<8x1xi32>
    %18 = arith.extui %17 : vector<8x1xi1> to vector<8x1xi32>
    %19 = arith.sitofp %18 : vector<8x1xi32> to vector<8x1xf32>
    %c0_7 = arith.constant 0 : index
    %c0_8 = arith.constant 0 : index
    %20 = vector.load %arg4[%c0_7, %c0_8] : memref<1x32xf32, #tpu.memory_space<vmem>>, vector<1x32xf32>
    %21 = vector.broadcast %19 : vector<8x1xf32> to vector<8x32xf32>
    %22 = vector.broadcast %20 : vector<1x32xf32> to vector<8x32xf32>
    %23 = arith.mulf %21, %22 : vector<8x32xf32>
    %24 = arith.addf %14, %23 : vector<8x32xf32>
    %c0_9 = arith.constant 0 : index
    %c0_10 = arith.constant 0 : index
    %25 = vector.load %arg5[%c0_9, %c0_10] : memref<8x32xf32, #tpu.memory_space<vmem>>, vector<8x32xf32>
    %26 = arith.addf %24, %25 : vector<8x32xf32>
    %c0_11 = arith.constant 0 : index
    %c0_12 = arith.constant 0 : index
    %27 = vector.load %arg6[%c0_11, %c0_12] : memref<1x32xf32, #tpu.memory_space<vmem>>, vector<1x32xf32>
    %c0_13 = arith.constant 0 : index
    %c0_14 = arith.constant 0 : index
    %28 = vector.load %arg7[%c0_13, %c0_14] : memref<1x32xf32, #tpu.memory_space<vmem>>, vector<1x32xf32>
    %cst_15 = arith.constant dense<0.000000e+00> : vector<8xf32>
    %29 = vector.multi_reduction <add>, %26, %cst_15 [1] : vector<8x32xf32> to vector<8xf32>
    %30 = vector.shape_cast %29 : vector<8xf32> to vector<8x1xf32>
    %cst_16 = arith.constant 3.200000e+01 : f32
    %31 = vector.broadcast %cst_16 : f32 to vector<8x1xf32>
    %32 = arith.divf %30, %31 : vector<8x1xf32>
    %33 = vector.broadcast %32 : vector<8x1xf32> to vector<8x32xf32>
    %34 = arith.subf %26, %33 : vector<8x32xf32>
    %35 = arith.mulf %34, %34 : vector<8x32xf32>
    %cst_17 = arith.constant dense<0.000000e+00> : vector<8xf32>
    %36 = vector.multi_reduction <add>, %35, %cst_17 [1] : vector<8x32xf32> to vector<8xf32>
    %37 = vector.shape_cast %36 : vector<8xf32> to vector<8x1xf32>
    %cst_18 = arith.constant 3.200000e+01 : f32
    %38 = vector.broadcast %cst_18 : f32 to vector<8x1xf32>
    %39 = arith.divf %37, %38 : vector<8x1xf32>
    %40 = vector.broadcast %32 : vector<8x1xf32> to vector<8x32xf32>
    %41 = arith.subf %26, %40 : vector<8x32xf32>
    %cst_19 = arith.constant 9.99999974E-6 : f32
    %42 = vector.broadcast %cst_19 : f32 to vector<8x1xf32>
    %43 = arith.addf %39, %42 : vector<8x1xf32>
    %44 = math.rsqrt %43 : vector<8x1xf32>
    %45 = vector.broadcast %44 : vector<8x1xf32> to vector<8x32xf32>
    %46 = arith.mulf %41, %45 : vector<8x32xf32>
    %47 = vector.broadcast %27 : vector<1x32xf32> to vector<8x32xf32>
    %48 = arith.mulf %46, %47 : vector<8x32xf32>
    %49 = vector.broadcast %28 : vector<1x32xf32> to vector<8x32xf32>
    %50 = arith.addf %48, %49 : vector<8x32xf32>
    %c0_20 = arith.constant 0 : index
    %c0_21 = arith.constant 0 : index
    %c0_22 = arith.constant 0 : index
    %51 = vector.load %arg8[%c0_20, %c0_21, %c0_22] : memref<1x8x32xf32, #tpu.memory_space<vmem>>, vector<1x8x32xf32>
    %52 = vector.shape_cast %51 : vector<1x8x32xf32> to vector<8x32xf32>
    %53 = vector.shape_cast %50 : vector<8x32xf32> to vector<1x8x32xf32>
    tpu.vector_store %arg8[%c0_20, %c0_21, %c0_22], %53 {strides = array<i32>} : memref<1x8x32xf32, #tpu.memory_space<vmem>>, vector<1x8x32xf32>,
    return
  }
  func.func @transform_0(%arg0: i32) -> (i32, i32, i32) {
    %c0_i32 = arith.constant 0 : i32
    %c0_i32_0 = arith.constant 0 : i32
    %c0_i32_1 = arith.constant 0 : i32
    return %arg0, %c0_i32, %c0_i32_0 : i32, i32, i32
  }
  func.func @transform_1(%arg0: i32) -> (i32, i32) {
    %c0_i32 = arith.constant 0 : i32
    %c0_i32_0 = arith.constant 0 : i32
    %c0_i32_1 = arith.constant 0 : i32
    return %c0_i32, %c0_i32_0 : i32, i32
  }
  func.func @transform_2(%arg0: i32) -> (i32, i32) {
    %c0_i32 = arith.constant 0 : i32
    %c0_i32_0 = arith.constant 0 : i32
    %c0_i32_1 = arith.constant 0 : i32
    return %c0_i32, %c0_i32_0 : i32, i32
  }
  func.func @transform_3(%arg0: i32) -> (i32, i32) {
    %c0_i32 = arith.constant 0 : i32
    %c0_i32_0 = arith.constant 0 : i32
    %c0_i32_1 = arith.constant 0 : i32
    return %c0_i32, %c0_i32_0 : i32, i32
  }
  func.func @transform_4(%arg0: i32) -> (i32, i32) {
    %c0_i32 = arith.constant 0 : i32
    %c0_i32_0 = arith.constant 0 : i32
    %c0_i32_1 = arith.constant 0 : i32
    return %c0_i32, %c0_i32_0 : i32, i32
  }
  func.func @transform_5(%arg0: i32) -> (i32, i32) {
    %c0_i32 = arith.constant 0 : i32
    %c0_i32_0 = arith.constant 0 : i32
    %c0_i32_1 = arith.constant 0 : i32
    return %c0_i32, %c0_i32_0 : i32, i32
  }
  func.func @transform_6(%arg0: i32) -> (i32, i32) {
    %c0_i32 = arith.constant 0 : i32
    %c0_i32_0 = arith.constant 0 : i32
    %c0_i32_1 = arith.constant 0 : i32
    return %c0_i32, %c0_i32_0 : i32, i32
  }
  func.func @transform_7(%arg0: i32) -> (i32, i32, i32) {
    %c0_i32 = arith.constant 0 : i32
    %c0_i32_0 = arith.constant 0 : i32
    %c0_i32_1 = arith.constant 0 : i32
    return %arg0, %c0_i32, %c0_i32_0 : i32, i32, i32
  }
}

</mosaic_0001>

<llo_original>
// kernel: tpu_custom_call.1
$region0: #{tpu_custom_call.1}
  #allocation0 [shape = 'u32[]', space=smem, size = 0x4, offset = 0x4, fixed_abs, tag = 'smem constant byte address 0x4 - core index']
  #allocation1 [shape = 'u32[144,128]{1,0:T(1,128)}', space=vmem, size = 0x12000, scoped, tag = 'internal scratch']
  %s0 = inlined_call_operand.vmem [shape: f32[2,4,192], index: 0, kind: input, shape index: {}]
  %s1 = inlined_call_operand.vmem [shape: f32[192,32], index: 1, kind: input, shape index: {}]
  %s2 = inlined_call_operand.vmem [shape: f32[1,32], index: 2, kind: input, shape index: {}]
  %s3 = inlined_call_operand.vmem [shape: f32[1,32], index: 3, kind: input, shape index: {}]
  %s4 = inlined_call_operand.vmem [shape: f32[8,32], index: 4, kind: input, shape index: {}]
  %s5 = inlined_call_operand.vmem [shape: f32[1,32], index: 5, kind: input, shape index: {}]
  %s6 = inlined_call_operand.vmem [shape: f32[1,32], index: 6, kind: input, shape index: {}]
  %s7 = inlined_call_operand.hbm [shape: f32[2,8,32], index: 7, kind: output, shape index: {}]
  %s8 = sld [smem:[#allocation0]]
  $region61: #{tpu_custom_call.1} parent=0
    _
  %s10 = ssub.s32 1, %s8
  %s11 = scalar_select 0, %s10, %s8
  $region1: #{tpu_custom_call.1} parent=0
    #allocation2 [shape = 'u8[8192]{0}', space=vmem, size = 0x2000, scoped, tag = 'output window, operand 0']
    #allocation3 [shape = 's32[2]{0}', space=sflag, size = 0x8, scoped, tag = 'scoped memory for tpu_custom_call.1']
    %12 = vsyncpa [#allocation3], 0
    %s13 = scalar_lea.sflag [#allocation3], 1
    %14 = vsyncpa %s13, 0
    loop: start=0, step=1, limit=4
    $region2: #{tpu_custom_call.1} parent=1 // loop_pre_header
      _
    $region3: #{tpu_custom_call.1} parent=1 // loop_header
      %s16 = sphi 0, %s20
      %p17 = scmp.ge.s32.totalorder %s16, 4
      %s26 = sphi 0, %s28
      %s29 = sphi 0, %s26
      %s30 = sphi 0, %s29
      %s46 = sphi 0, %s30
      %s50 = sphi 0, %s50
      %s52 = sphi 0, %s50
      %s53 = sphi 0, %s52
      %s67 = sphi 0, %s53
      %s71 = sphi 0, %s71
      %s73 = sphi 0, %s71
      %s74 = sphi 0, %s73
      %s88 = sphi 0, %s74
      %s92 = sphi 0, %s92
      %s94 = sphi 0, %s92
      %s95 = sphi 0, %s94
      %s109 = sphi 0, %s95
      %s113 = sphi 0, %s113
      %s115 = sphi 0, %s113
      %s116 = sphi 0, %s115
      %s130 = sphi 0, %s116
      %s134 = sphi 0, %s134
      %s136 = sphi 0, %s134
      %s137 = sphi 0, %s136
      %s151 = sphi 0, %s137
      %s155 = sphi 0, %s155
      %s157 = sphi 0, %s155
      %s158 = sphi 0, %s157
      %s172 = sphi 0, %s158
      %s178 = sphi 0, %s180
      %s181 = sphi 0, %s178
      %s182 = sphi 0, %s181
      %s198 = sphi 0, %s182
    $region4: #{tpu_custom_call.1} parent=1 // loop_header_branch
      %19 = sbr.rel (%p17) target = $region8
    $region5: #{tpu_custom_call.1} parent=1 // loop_body
      %s21 = ssub.s32 %s16, 1
      %s22 = ssub.s32 %s16, 2
      %s23 = sadd.s32 %s16, 1
      %s24 = ssub.s32 %s16, %s23
      %p25 = scmp.eq.s32.totalorder %s24, 0
      %s27 = sadd.s32 %s26, 1
      %s28 = scalar_select %p25, %s26, %s27
      %p31 = pneg %p25
      %p32 = scmp.eq.s32.totalorder %s16, 1
      %p33 = por %p31, %p32
      %p34 = scmp.ne.s32.totalorder %s26, %s29
      %p35 = scmp.eq.s32.totalorder %s16, 0
      %p36 = por %p34, %p35
      %p37 = scmp.ne.s32.totalorder %s26, %s29
      %p38 = scmp.eq.s32.totalorder %s21, 1
      %p39 = por %p37, %p38
      %p40 = scmp.ne.s32.totalorder %s29, %s30
      %p41 = scmp.eq.s32.totalorder %s21, 0
      %p42 = por %p40, %p41
      %p43 = scmp.ne.s32.totalorder %s29, %s30
      %p44 = scmp.eq.s32.totalorder %s22, 1
      %p45 = por %p43, %p44
      %p47 = scmp.ne.s32.totalorder %s30, %s46
      %p48 = scmp.eq.s32.totalorder %s22, 0
      %p49 = por %p47, %p48
      %s51 = sadd.s32 %s50, 1
      %p54 = scmp.eq.s32.totalorder %s16, 1
      %p55 = scmp.ne.s32.totalorder %s50, %s52
      %p56 = scmp.eq.s32.totalorder %s16, 0
      %p57 = por %p55, %p56
      %p58 = scmp.ne.s32.totalorder %s50, %s52
      %p59 = scmp.eq.s32.totalorder %s21, 1
      %p60 = por %p58, %p59
      %p61 = scmp.ne.s32.totalorder %s52, %s53
      %p62 = scmp.eq.s32.totalorder %s21, 0
      %p63 = por %p61, %p62
      %p64 = scmp.ne.s32.totalorder %s52, %s53
      %p65 = scmp.eq.s32.totalorder %s22, 1
      %p66 = por %p64, %p65
      %p68 = scmp.ne.s32.totalorder %s53, %s67
      %p69 = scmp.eq.s32.totalorder %s22, 0
      %p70 = por %p68, %p69
      %s72 = sadd.s32 %s71, 1
      %p75 = scmp.eq.s32.totalorder %s16, 1
      %p76 = scmp.ne.s32.totalorder %s71, %s73
      %p77 = scmp.eq.s32.totalorder %s16, 0
      %p78 = por %p76, %p77
      %p79 = scmp.ne.s32.totalorder %s71, %s73
      %p80 = scmp.eq.s32.totalorder %s21, 1
      %p81 = por %p79, %p80
      %p82 = scmp.ne.s32.totalorder %s73, %s74
      %p83 = scmp.eq.s32.totalorder %s21, 0
      %p84 = por %p82, %p83
      %p85 = scmp.ne.s32.totalorder %s73, %s74
      %p86 = scmp.eq.s32.totalorder %s22, 1
      %p87 = por %p85, %p86
      %p89 = scmp.ne.s32.totalorder %s74, %s88
      %p90 = scmp.eq.s32.totalorder %s22, 0
      %p91 = por %p89, %p90
      %s93 = sadd.s32 %s92, 1
      %p96 = scmp.eq.s32.totalorder %s16, 1
      %p97 = scmp.ne.s32.totalorder %s92, %s94
      %p98 = scmp.eq.s32.totalorder %s16, 0
      %p99 = por %p97, %p98
      %p100 = scmp.ne.s32.totalorder %s92, %s94
      %p101 = scmp.eq.s32.totalorder %s21, 1
      %p102 = por %p100, %p101
      %p103 = scmp.ne.s32.totalorder %s94, %s95
      %p104 = scmp.eq.s32.totalorder %s21, 0
      %p105 = por %p103, %p104
      %p106 = scmp.ne.s32.totalorder %s94, %s95
      %p107 = scmp.eq.s32.totalorder %s22, 1
      %p108 = por %p106, %p107
      %p110 = scmp.ne.s32.totalorder %s95, %s109
      %p111 = scmp.eq.s32.totalorder %s22, 0
      %p112 = por %p110, %p111
      %s114 = sadd.s32 %s113, 1
      %p117 = scmp.eq.s32.totalorder %s16, 1
      %p118 = scmp.ne.s32.totalorder %s113, %s115
      %p119 = scmp.eq.s32.totalorder %s16, 0
      %p120 = por %p118, %p119
      %p121 = scmp.ne.s32.totalorder %s113, %s115
      %p122 = scmp.eq.s32.totalorder %s21, 1
      %p123 = por %p121, %p122
      %p124 = scmp.ne.s32.totalorder %s115, %s116
      %p125 = scmp.eq.s32.totalorder %s21, 0
      %p126 = por %p124, %p125
      %p127 = scmp.ne.s32.totalorder %s115, %s116
      %p128 = scmp.eq.s32.totalorder %s22, 1
      %p129 = por %p127, %p128
      %p131 = scmp.ne.s32.totalorder %s116, %s130
      %p132 = scmp.eq.s32.totalorder %s22, 0
      %p133 = por %p131, %p132
      %s135 = sadd.s32 %s134, 1
      %p138 = scmp.eq.s32.totalorder %s16, 1
      %p139 = scmp.ne.s32.totalorder %s134, %s136
      %p140 = scmp.eq.s32.totalorder %s16, 0
      %p141 = por %p139, %p140
      %p142 = scmp.ne.s32.totalorder %s134, %s136
      %p143 = scmp.eq.s32.totalorder %s21, 1
      %p144 = por %p142, %p143
      %p145 = scmp.ne.s32.totalorder %s136, %s137
      %p146 = scmp.eq.s32.totalorder %s21, 0
      %p147 = por %p145, %p146
      %p148 = scmp.ne.s32.totalorder %s136, %s137
      %p149 = scmp.eq.s32.totalorder %s22, 1
      %p150 = por %p148, %p149
      %p152 = scmp.ne.s32.totalorder %s137, %s151
      %p153 = scmp.eq.s32.totalorder %s22, 0
      %p154 = por %p152, %p153
      %s156 = sadd.s32 %s155, 1
      %p159 = scmp.eq.s32.totalorder %s16, 1
      %p160 = scmp.ne.s32.totalorder %s155, %s157
      %p161 = scmp.eq.s32.totalorder %s16, 0
      %p162 = por %p160, %p161
      %p163 = scmp.ne.s32.totalorder %s155, %s157
      %p164 = scmp.eq.s32.totalorder %s21, 1
      %p165 = por %p163, %p164
      %p166 = scmp.ne.s32.totalorder %s157, %s158
      %p167 = scmp.eq.s32.totalorder %s21, 0
      %p168 = por %p166, %p167
      %p169 = scmp.ne.s32.totalorder %s157, %s158
      %p170 = scmp.eq.s32.totalorder %s22, 1
      %p171 = por %p169, %p170
      %p173 = scmp.ne.s32.totalorder %s158, %s172
      %p174 = scmp.eq.s32.totalorder %s22, 0
      %p175 = por %p173, %p174
      %s176 = ssub.s32 %s16, %s23
      %p177 = scmp.eq.s32.totalorder %s176, 0
      %s179 = sadd.s32 %s178, 1
      %s180 = scalar_select %p177, %s178, %s179
      %p183 = pneg %p177
      %p184 = scmp.eq.s32.totalorder %s16, 1
      %p185 = por %p183, %p184
      %p186 = scmp.ne.s32.totalorder %s178, %s181
      %p187 = scmp.eq.s32.totalorder %s16, 0
      %p188 = por %p186, %p187
      %p189 = scmp.ne.s32.totalorder %s178, %s181
      %p190 = scmp.eq.s32.totalorder %s21, 1
      %p191 = por %p189, %p190
      %p192 = scmp.ne.s32.totalorder %s181, %s182
      %p193 = scmp.eq.s32.totalorder %s21, 0
      %p194 = por %p192, %p193
      %p195 = scmp.ne.s32.totalorder %s181, %s182
      %p196 = scmp.eq.s32.totalorder %s22, 1
      %p197 = por %p195, %p196
      %p199 = scmp.ne.s32.totalorder %s182, %s198
      %p200 = scmp.eq.s32.totalorder %s22, 0
      %p201 = por %p199, %p200
      %p202 = scmp.le.s32.totalorder 1, %s16
      %p203 = scmp.lt.s32.totalorder %s16, 3
      %p204 = pnand %p202, %p203
      %p205 = pneg %p204
      // Predicated region
      $region9: #{tpu_custom_call.1} parent=5 // pred_check
        _
      $region10: #{tpu_custom_call.1} parent=5 // pred_check_branch
        %207 = sbr.rel (%p204) target = $region12
      $region11: #{tpu_custom_call.1} parent=5 // pred_region
        %s208 = ssub.s32 %s16, 1
        // Predicated region
        $region13: #{tpu_custom_call.1} parent=11 // pred_check
          %p209 = pneg %p63
        $region14: #{tpu_custom_call.1} parent=11 // pred_check_branch
          %211 = sbr.rel (%p209) target = $region16
        $region15: #{tpu_custom_call.1} parent=11 // pred_region
          _
        $region16: #{tpu_custom_call.1} parent=11 // pred_fallthru
          _
        // Predicated region
        $region17: #{tpu_custom_call.1} parent=11 // pred_check
          %p212 = pneg %p84
        $region18: #{tpu_custom_call.1} parent=11 // pred_check_branch
          %214 = sbr.rel (%p212) target = $region20
        $region19: #{tpu_custom_call.1} parent=11 // pred_region
          _
        $region20: #{tpu_custom_call.1} parent=11 // pred_fallthru
          _
        // Predicated region
        $region21: #{tpu_custom_call.1} parent=11 // pred_check
          %p215 = pneg %p105
        $region22: #{tpu_custom_call.1} parent=11 // pred_check_branch
          %217 = sbr.rel (%p215) target = $region24
        $region23: #{tpu_custom_call.1} parent=11 // pred_region
          _
        $region24: #{tpu_custom_call.1} parent=11 // pred_fallthru
          _
        // Predicated region
        $region25: #{tpu_custom_call.1} parent=11 // pred_check
          %p218 = pneg %p126
        $region26: #{tpu_custom_call.1} parent=11 // pred_check_branch
          %220 = sbr.rel (%p218) target = $region28
        $region27: #{tpu_custom_call.1} parent=11 // pred_region
          _
        $region28: #{tpu_custom_call.1} parent=11 // pred_fallthru
          _
        // Predicated region
        $region29: #{tpu_custom_call.1} parent=11 // pred_check
          %p221 = pneg %p147
        $region30: #{tpu_custom_call.1} parent=11 // pred_check_branch
          %223 = sbr.rel (%p221) target = $region32
        $region31: #{tpu_custom_call.1} parent=11 // pred_region
          _
        $region32: #{tpu_custom_call.1} parent=11 // pred_fallthru
          _
        // Predicated region
        $region33: #{tpu_custom_call.1} parent=11 // pred_check
          %p224 = pneg %p168
        $region34: #{tpu_custom_call.1} parent=11 // pred_check_branch
          %226 = sbr.rel (%p224) target = $region36
        $region35: #{tpu_custom_call.1} parent=11 // pred_region
          _
        $region36: #{tpu_custom_call.1} parent=11 // pred_fallthru
          _
      $region12: #{tpu_custom_call.1} parent=5 // pred_fallthru
        _
      %p227 = scmp.lt.s32.totalorder %s16, 2
      // Predicated region
      $region37: #{tpu_custom_call.1} parent=5 // pred_check
        %p228 = pneg %p227
      $region38: #{tpu_custom_call.1} parent=5 // pred_check_branch
        %230 = sbr.rel (%p228) target = $region40
      $region39: #{tpu_custom_call.1} parent=5 // pred_region
        // Predicated region
        $region41: #{tpu_custom_call.1} parent=39 // pred_check
          %p231 = pneg %p36
        $region42: #{tpu_custom_call.1} parent=39 // pred_check_branch
          %233 = sbr.rel (%p231) target = $region44
        $region43: #{tpu_custom_call.1} parent=39 // pred_region
          %p234 = scmp.lt.s32.totalorder %s16, 1
          %s235 = scalar_select %p234, %s16, 1
          %s236 = smul.addr %s235, 2
          %s237 = smul.addr %s236, 4
          %s238 = scalar_lea.vmem %s0, %s237
        $region44: #{tpu_custom_call.1} parent=39 // pred_fallthru
          _
      $region40: #{tpu_custom_call.1} parent=5 // pred_fallthru
        _
      %p239 = scmp.le.s32.totalorder 1, %s16
      %p240 = scmp.lt.s32.totalorder %s16, 3
      %p241 = pnand %p239, %p240
      %p242 = pneg %p241
      // Predicated region
      $region45: #{tpu_custom_call.1} parent=5 // pred_check
        _
      $region46: #{tpu_custom_call.1} parent=5 // pred_check_branch
        %244 = sbr.rel (%p241) target = $region48
      $region47: #{tpu_custom_call.1} parent=5 // pred_region
        %s245 = ssub.s32 %s16, 1
        %p246 = scmp.lt.s32.totalorder %s21, 1
        %s247 = scalar_select %p246, %s21, 1
        %s248 = smul.addr %s247, 2
        %s249 = smul.addr %s248, 4
        %s250 = scalar_lea.vmem %s0, %s249
        %p251 = pneg %p42
        %p252 = pneg %p39
        %p253 = pneg %p63
        %p254 = pneg %p60
        %p255 = pneg %p84
        %p256 = pneg %p81
        %p257 = pneg %p105
        %p258 = pneg %p102
        %p259 = pneg %p126
        %p260 = pneg %p123
        %p261 = pneg %p147
        %p262 = pneg %p144
        %p263 = pneg %p168
        %p264 = pneg %p165
        %p265 = pneg %p194
        %p266 = pneg %p191
        %s267 = sand.u32 %s181, 1
        %s268 = scalar_lea.sflag [#allocation3], %s267
        %s269 = sand.u32 %s181, 1
        %s270 = smul.addr %s269, 8
        %s271 = scalar_lea.vmem [#allocation2], %s270
        %p272 = scmp.lt.s32.totalorder %s21, 1
        %s273 = scalar_select %p272, %s21, 1
        %s274 = smul.addr %s273, 2
        %s275 = smul.addr %s274, 4
        %s276 = scalar_lea.vmem %s0, %s275
        %v277 = vld [vmem:[%s276] sm:$0xff]
        %v278 = vld [vmem:[%s1] sm:$0xff]
        %v279 = vld [vmem:[%s1 + $0x8] sm:$0xff]
        %v280 = vld [vmem:[%s1 + $0x10] sm:$0xff]
        %v281 = vld [vmem:[%s1 + $0x18] sm:$0xff]
        %v282 = vld [vmem:[%s1 + $0x20] sm:$0xff]
        %v283 = vld [vmem:[%s1 + $0x28] sm:$0xff]
        %v284 = vld [vmem:[%s1 + $0x30] sm:$0xff]
        %v285 = vld [vmem:[%s1 + $0x38] sm:$0xff]
        %v286 = vld [vmem:[%s1 + $0x40] sm:$0xff]
        %v287 = vld [vmem:[%s1 + $0x48] sm:$0xff]
        %v288 = vld [vmem:[%s1 + $0x50] sm:$0xff]
        %v289 = vld [vmem:[%s1 + $0x58] sm:$0xff]
        %v290 = vld [vmem:[%s1 + $0x60] sm:$0xff]
        %v291 = vld [vmem:[%s1 + $0x68] sm:$0xff]
        %v292 = vld [vmem:[%s1 + $0x70] sm:$0xff]
        %v293 = vld [vmem:[%s1 + $0x78] sm:$0xff]
        %v294 = vld [vmem:[%s1 + $0x80] sm:$0xff]
        %v295 = vld [vmem:[%s1 + $0x88] sm:$0xff]
        %v296 = vld [vmem:[%s1 + $0x90] sm:$0xff]
        %v297 = vld [vmem:[%s1 + $0x98] sm:$0xff]
        %v298 = vld [vmem:[%s1 + $0xa0] sm:$0xff]
        %v299 = vld [vmem:[%s1 + $0xa8] sm:$0xff]
        %v300 = vld [vmem:[%s1 + $0xb0] sm:$0xff]
        %v301 = vld [vmem:[%s1 + $0xb8] sm:$0xff]
        %v302 = vld [vmem:[%s2] sm:$0x1]
        %v304 = vlaneseq
        %v305 = vshrl.u32 %v304, 7
        %v306 = vsub.s32 0, %v305
        %v307 = vrot.slane %v302, %v306
        %v310 = vcombine.high %v277, %v277
        %vm311 = vcmask 523264
        %v312 = vsel %vm311, %v310, 0
        %314 = vmatprep.subr.mxu0 0.0
        %315 = vmatpush1.msra.mxu0 %v293
        %316 = vmatprep.subr.mxu0 0.0
        %317 = vmatpush1.msra.mxu0 %v292
        %318 = vmatprep.subr.mxu0 0.0
        %319 = vmatpush1.msra.mxu0 %v291
        %320 = vmatprep.subr.mxu0 0.0
        %321 = vmatpush1.msra.mxu0 %v290
        %322 = vmatprep.subr.mxu0 0.0
        %323 = vmatpush1.msra.mxu0 %v289
        %324 = vmatprep.subr.mxu0 0.0
        %325 = vmatpush1.msra.mxu0 %v288
        %326 = vmatprep.subr.mxu0 0.0
        %327 = vmatpush1.msra.mxu0 %v287
        %328 = vmatprep.subr.mxu0 0.0
        %329 = vmatpush1.msra.mxu0 %v286
        %330 = vmatprep.subr.mxu0 0.0
        %331 = vmatpush1.msra.mxu0 %v285
        %332 = vmatprep.subr.mxu0 0.0
        %333 = vmatpush1.msra.mxu0 %v284
        %334 = vmatprep.subr.mxu0 0.0
        %335 = vmatpush1.msra.mxu0 %v283
        %336 = vmatprep.subr.mxu0 0.0
        %337 = vmatpush1.msra.mxu0 %v282
        %338 = vmatprep.subr.mxu0 0.0
        %339 = vmatpush1.msra.mxu0 %v281
        %340 = vmatprep.subr.mxu0 0.0
        %341 = vmatpush1.msra.mxu0 %v280
        %342 = vmatprep.subr.mxu0 0.0
        %343 = vmatpush1.msra.mxu0 %v279
        %344 = vmatprep.subr.mxu0 0.0
        %345 = vmatpush1.msra.mxu0 %v278
        %346 = vmatprep.subr.mxu0 0.0
        %347 = vmatpush2.msra.mxu0 0.0
        %348 = vmatprep.subr.mxu0 0.0
        %349 = vmatpush2.msra.mxu0 0.0
        %350 = vmatprep.subr.mxu0 0.0
        %351 = vmatpush2.msra.mxu0 0.0
        %352 = vmatprep.subr.mxu0 0.0
        %353 = vmatpush2.msra.mxu0 0.0
        %354 = vmatprep.subr.mxu0 0.0
        %355 = vmatpush2.msra.mxu0 0.0
        %356 = vmatprep.subr.mxu0 0.0
        %357 = vmatpush2.msra.mxu0 0.0
        %358 = vmatprep.subr.mxu0 0.0
        %359 = vmatpush2.msra.mxu0 0.0
        %360 = vmatprep.subr.mxu0 0.0
        %361 = vmatpush2.msra.mxu0 0.0
        %362 = vmatprep.subr.mxu0 0.0
        %363 = vmatpush2.msra.mxu0 %v301
        %364 = vmatprep.subr.mxu0 0.0
        %365 = vmatpush2.msra.mxu0 %v300
        %366 = vmatprep.subr.mxu0 0.0
        %367 = vmatpush2.msra.mxu0 %v299
        %368 = vmatprep.subr.mxu0 0.0
        %369 = vmatpush2.msra.mxu0 %v298
        %370 = vmatprep.subr.mxu0 0.0
        %371 = vmatpush2.msra.mxu0 %v297
        %372 = vmatprep.subr.mxu0 0.0
        %373 = vmatpush2.msra.mxu0 %v296
        %374 = vmatprep.subr.mxu0 0.0
        %375 = vmatpush2.msra.mxu0 %v295
        %376 = vmatprep.subr.mxu0 0.0
        %377 = vmatpush2.msra.mxu0 %v294
        %378 = vmatprep.mubr.f32.mxu0 %v312
        %379 = vmatmul.mubr.f32.gmra.mxu0 %v277
        %v380 = vpop.f32.mrf.mxu0
        %v381 = vadd.f32 %v307, %v380
        %v382 = vpop.f32.mrf.mxu0
        %383 = vdwg.mxu0
        %v384 = vlaneseq
        %v385 = vshrl.u32 %v384, 7
        %v386 = vlaneseq
        %v387 = vand.u32 %v386, 127
        %v388 = vadd.s32 %v387, 1
        %vm389 = vcmp.eq.s32.totalorder %v385, %v388
        %v390 = vsel %vm389, 1, 0
        %v391 = vcvt.s32.f32 %v390
        %vm392 = vcmp.eq.s32.totalorder %v385, 0
        %v393 = vsel %vm392, 1, 0
        %v394 = vcvt.s32.f32 %v393
        %v395 = vld [vmem:[%s3] sm:$0x1]
        %v397 = vlaneseq
        %v398 = vshrl.u32 %v397, 7
        %v399 = vsub.s32 0, %v398
        %v400 = vrot.slane %v395, %v399
        %v402 = vmul.f32 %v394, %v400
        %vm403 = vcmask 31744
        %v405 = vsel %vm403, %v391, 0
        %vm407 = vcmask 1043456
        %v409 = vsel %vm407, %v381, 0
        %411 = vmatprep.subr.mxu0 0.0
        %412 = vmatpush1.msra.mxu0 0.0
        %413 = vmatprep.subr.mxu0 0.0
        %414 = vmatpush1.msra.mxu0 0.0
        %415 = vmatprep.subr.mxu0 0.0
        %416 = vmatpush1.msra.mxu0 0.0
        %417 = vmatprep.subr.mxu0 0.0
        %418 = vmatpush1.msra.mxu0 0.0
        %419 = vmatprep.subr.mxu0 0.0
        %420 = vmatpush1.msra.mxu0 0.0
        %421 = vmatprep.subr.mxu0 0.0
        %422 = vmatpush1.msra.mxu0 0.0
        %423 = vmatprep.subr.mxu0 0.0
        %424 = vmatpush1.msra.mxu0 0.0
        %425 = vmatprep.subr.mxu0 0.0
        %426 = vmatpush1.msra.mxu0 0.0
        %427 = vmatprep.subr.mxu0 0.0
        %428 = vmatpush1.msra.mxu0 0.0
        %429 = vmatprep.subr.mxu0 0.0
        %430 = vmatpush1.msra.mxu0 0.0
        %431 = vmatprep.subr.mxu0 0.0
        %432 = vmatpush1.msra.mxu0 0.0
        %433 = vmatprep.subr.mxu0 0.0
        %434 = vmatpush1.msra.mxu0 0.0
        %435 = vmatprep.subr.mxu0 0.0
        %436 = vmatpush1.msra.mxu0 0.0
        %437 = vmatprep.subr.mxu0 0.0
        %438 = vmatpush1.msra.mxu0 0.0
        %439 = vmatprep.subr.mxu0 0.0
        %440 = vmatpush1.msra.mxu0 0.0
        %441 = vmatprep.subr.mxu0 0.0
        %442 = vmatpush1.msra.mxu0 %v409
        %443 = vmatprep.subr.mxu0 0.0
        %444 = vmatpush2.msra.mxu0 0.0
        %445 = vmatprep.subr.mxu0 0.0
        %446 = vmatpush2.msra.mxu0 0.0
        %447 = vmatprep.subr.mxu0 0.0
        %448 = vmatpush2.msra.mxu0 0.0
        %449 = vmatprep.subr.mxu0 0.0
        %450 = vmatpush2.msra.mxu0 0.0
        %451 = vmatprep.subr.mxu0 0.0
        %452 = vmatpush2.msra.mxu0 0.0
        %453 = vmatprep.subr.mxu0 0.0
        %454 = vmatpush2.msra.mxu0 0.0
        %455 = vmatprep.subr.mxu0 0.0
        %456 = vmatpush2.msra.mxu0 0.0
        %457 = vmatprep.subr.mxu0 0.0
        %458 = vmatpush2.msra.mxu0 0.0
        %459 = vmatprep.subr.mxu0 0.0
        %460 = vmatpush2.msra.mxu0 0.0
        %461 = vmatprep.subr.mxu0 0.0
        %462 = vmatpush2.msra.mxu0 0.0
        %463 = vmatprep.subr.mxu0 0.0
        %464 = vmatpush2.msra.mxu0 0.0
        %465 = vmatprep.subr.mxu0 0.0
        %466 = vmatpush2.msra.mxu0 0.0
        %467 = vmatprep.subr.mxu0 0.0
        %468 = vmatpush2.msra.mxu0 0.0
        %469 = vmatprep.subr.mxu0 0.0
        %470 = vmatpush2.msra.mxu0 0.0
        %471 = vmatprep.subr.mxu0 0.0
        %472 = vmatpush2.msra.mxu0 0.0
        %473 = vmatprep.subr.mxu0 0.0
        %474 = vmatpush2.msra.mxu0 0.0
        %475 = vmatprep.mubr.f32.mxu0 0.0
        %476 = vmatmul.mubr.f32.gmra.mxu0 %v405
        %v477 = vpop.f32.mrf.mxu0
        %v478 = vadd.f32 %v402, %v477
        %v479 = vpop.f32.mrf.mxu0
        %480 = vdwg.mxu0
        %v481 = vld [vmem:[%s4] sm:$0xff]
        %v482 = vadd.f32 %v478, %v481
        %v483 = vld [vmem:[%s5] sm:$0x1]
        %v484 = vld [vmem:[%s6] sm:$0x1]
        %vm485 = vcmask 261120
        %v486 = vsel %vm485, %v482, 0.0
        %487 = vadd.xlane.f32.xlu0 %v486
        %v488 = vpop.xlane.xlu0 %487
        %v489 = vrcp.pop 32.0
        %v490 = vmul.f32 %v488, %v489
        %v491 = vsub.f32 %v482, %v490
        %v492 = vmul.f32 %v491, %v491
        %v493 = vsel %vm485, %v492, 0.0
        %494 = vadd.xlane.f32.xlu0 %v493
        %v495 = vpop.xlane.xlu0 %494
        %v496 = vmul.f32 %v495, %v489
        %v497 = vadd.f32 %v496, 1e-05
        %v498 = vrsqrt.pop %v497
        %v499 = vmul.f32 %v491, %v498
        %v501 = vlaneseq
        %v502 = vshrl.u32 %v501, 7
        %v503 = vsub.s32 0, %v502
        %v504 = vrot.slane %v483, %v503
        %v506 = vmul.f32 %v499, %v504
        %v508 = vlaneseq
        %v509 = vshrl.u32 %v508, 7
        %v510 = vsub.s32 0, %v509
        %v511 = vrot.slane %v484, %v510
        %v513 = vadd.f32 %v506, %v511
        %514 = vst.msk [vmem:[%s271] sm:$0xff] %vm485, %v513
        %s515 = sand.u32 %s181, 1
        %s516 = scalar_lea.sflag [#allocation3], %s515
        %s517 = sand.u32 %s181, 1
        %s518 = smul.addr %s517, 8
        %s519 = scalar_lea.vmem [#allocation2], %s518
        // Predicated region
        $region49: #{tpu_custom_call.1} parent=47 // pred_check
          %p520 = pneg %p191
        $region50: #{tpu_custom_call.1} parent=47 // pred_check_branch
          %522 = sbr.rel (%p520) target = $region52
        $region51: #{tpu_custom_call.1} parent=47 // pred_region
          %s524 = ssub.s32 128, 128
          %525 = vsyncadd %s516, %s524
          %s526 = smul.addr %s21, 128
          %s527 = scalar_lea.hbm %s7, %s526
          %s529 = sshll.u32 %s519, 4
          %s530 = int_to_ptr.vmem [resolvable:$true] %s529
          %532 = dma.vmem_to_hbm [thread:$0]  %s530, 128, %s527, %s516
        $region52: #{tpu_custom_call.1} parent=47 // pred_fallthru
          _
      $region48: #{tpu_custom_call.1} parent=5 // pred_fallthru
        _
      %p533 = scmp.le.s32.totalorder 2, %s16
      // Predicated region
      $region53: #{tpu_custom_call.1} parent=5 // pred_check
        %p534 = pneg %p533
      $region54: #{tpu_custom_call.1} parent=5 // pred_check_branch
        %536 = sbr.rel (%p534) target = $region56
      $region55: #{tpu_custom_call.1} parent=5 // pred_region
        %s537 = ssub.s32 %s16, 2
        // Predicated region
        $region57: #{tpu_custom_call.1} parent=55 // pred_check
          %p538 = pneg %p197
        $region58: #{tpu_custom_call.1} parent=55 // pred_check_branch
          %540 = sbr.rel (%p538) target = $region60
        $region59: #{tpu_custom_call.1} parent=55 // pred_region
          %s541 = sand.u32 %s182, 1
          %s542 = scalar_lea.sflag [#allocation3], %s541
          %s543 = sand.u32 %s182, 1
          %s544 = smul.addr %s543, 8
          %s545 = scalar_lea.vmem [#allocation2], %s544
          %546 = dma.done %s542, 128
        $region60: #{tpu_custom_call.1} parent=55 // pred_fallthru
          _
      $region56: #{tpu_custom_call.1} parent=5 // pred_fallthru
        _
    $region6: #{tpu_custom_call.1} parent=1 // loop_footer
      %s20 = sadd.s32 1, %s16
    $region7: #{tpu_custom_call.1} parent=1 // loop_footer_branch
      %15 = sbr.rel target = $region3
    $region8: #{tpu_custom_call.1} parent=1 // loop_exit
      _
    %547 = vsyncpa [#allocation3], 1
    %s548 = scalar_lea.sflag [#allocation3], 1
    %549 = vsyncpa %s548, 1

</llo_original>
